<compile_context>
chip_gen: v6e
topology: v6e:2x2x1
jax: 0.10.0
libtpu: 0.0.40
codegen_flags: <defaults>
</compile_context>

<pallas_src>
import functools

import jax
import jax.numpy as jnp
from jax.experimental import pallas as pl
from jax.experimental.pallas import tpu as pltpu


def ffn_kernel(x_ref, w2_ref, b2_ref, w1_ref, b1_ref, g_ref, beta_ref, o_ref,
               *, exact_expm1=True):
    # x tile: (tm, D). Matmuls run with bf16 operands on the MXU (f32 accumulate);
    # ELU / residual / LayerNorm stay in f32 (v5e has no bf16 VPU/EUP).
    x_f32 = x_ref[...].astype(jnp.float32)
    x_bf16 = x_ref[...].astype(jnp.bfloat16)

    # fc2: x @ W2^T + b2
    h = jnp.dot(x_bf16, w2_ref[...], preferred_element_type=jnp.float32) + b2_ref[...]

    # ELU (alpha = 1.0). expm1 avoids cancellation for small negative h.
    elu_neg = jnp.expm1(h) if exact_expm1 else jnp.exp(h) - 1.0
    h = jnp.where(h > 0.0, h, elu_neg)

    # fc1: elu(...) @ W1^T + b1
    a = jnp.dot(h.astype(jnp.bfloat16), w1_ref[...],
                preferred_element_type=jnp.float32) + b1_ref[...]

    # residual + LayerNorm over the feature axis (eps = 1e-5, PyTorch default)
    y = x_f32 + a
    mean = jnp.mean(y, axis=-1, keepdims=True)
    var = jnp.mean((y - mean) ** 2, axis=-1, keepdims=True)
    out = (y - mean) * jax.lax.rsqrt(var + 1e-5) * g_ref[...] + beta_ref[...]

    o_ref[...] = out.astype(o_ref.dtype)


def _round_up(a, b):
    return (a + b - 1) // b * b


def _build_call(n_pad, d, tm, out_dtype, *, buffered_consts, exact_expm1):
    """Build the pallas_call. buffered_consts=True single-buffers constant blocks."""
    const_kwargs = dict(pipeline_mode=pl.Buffered(1)) if buffered_consts else {}

    def const_spec(shape):
        # Constant index_map: the same block is reused at every grid step, so it
        # does not need double buffering (keeps VMEM headroom on v7x as D grows).
        return pl.BlockSpec(shape, lambda i: (0,) * len(shape), **const_kwargs)

    kernel = functools.partial(ffn_kernel, exact_expm1=exact_expm1)
    return pl.pallas_call(
        kernel,
        out_shape=jax.ShapeDtypeStruct((n_pad, d), out_dtype),
        grid_spec=pltpu.PrefetchScalarGridSpec(
            num_scalar_prefetch=0,
            grid=(n_pad // tm,),
            in_specs=[
                pl.BlockSpec((tm, d), lambda i: (i, 0)),   # x tile (pipelined)
                const_spec((d, d)),                        # W2^T (bf16)
                const_spec((1, d)),                        # b2
                const_spec((d, d)),                        # W1^T (bf16)
                const_spec((1, d)),                        # b1
                const_spec((1, d)),                        # gamma
                const_spec((1, d)),                        # beta
            ],
            out_specs=pl.BlockSpec((tm, d), lambda i: (i, 0)),
        ),
        compiler_params=pltpu.CompilerParams(
            dimension_semantics=("parallel",),   # megacore-shardable on v7x
        ),
    )


def ffn_layer(x, w1, b1, w2, b2, gamma, beta, *, tm=512):
    """x: (B, S, D). w1/w2: (D, D) in PyTorch layout (out, in). Output keeps x.dtype."""
    B, S, D = x.shape
    N = B * S

    # Sublane granularity of the activation dtype (8 rows for f32, 16 for bf16).
    sub = max(8, 32 // jnp.dtype(x.dtype).itemsize)

    # Pick the row tile: as large as requested, but capped so tiles stay aligned
    # and so there are >= 2 grid steps whenever the data allows it (a single
    # giant tile would serialize on one of v7x's two TensorCores).
    half = pl.cdiv(N, 2)
    cap = _round_up(half, 128) if half >= 128 else _round_up(half, sub)
    tm_eff = _round_up(max(sub, min(tm, cap)), sub)

    grid_m = pl.cdiv(N, tm_eff)
    n_pad = grid_m * tm_eff

    x2d = x.reshape(N, D)
    if n_pad != N:
        x2d = jnp.pad(x2d, ((0, n_pad - N), (0, 0)))

    # Pre-transpose so the kernel does plain x @ Wt (== x @ W^T) and cast weights
    # to bf16: full-rate MXU on every generation and half the weight DMA bytes.
    w1t = w1.T.astype(jnp.bfloat16)
    w2t = w2.T.astype(jnp.bfloat16)
    b1r = b1.reshape(1, D).astype(jnp.float32)
    b2r = b2.reshape(1, D).astype(jnp.float32)
    g_r = gamma.reshape(1, D).astype(jnp.float32)
    be_r = beta.reshape(1, D).astype(jnp.float32)

    args = (x2d, w2t, b2r, w1t, b1r, g_r, be_r)

    # Preferred config first; fall back if this jax/Mosaic version rejects
    # single-buffered constant blocks or the expm1 lowering.
    attempts = (
        dict(buffered_consts=True, exact_expm1=True),
        dict(buffered_consts=False, exact_expm1=True),
        dict(buffered_consts=False, exact_expm1=False),
    )
    out = None
    last_err = None
    for kw in attempts:
        try:
            out = _build_call(n_pad, D, tm_eff, x.dtype, **kw)(*args)
            break
        except Exception as e:  # keep the kernel runnable across jax versions
            last_err = e
    if out is None:
        raise last_err

    return out[:N].reshape(B, S, D)


def _reference_f32(x, w1, b1, w2, b2, gamma, beta):
    # Pure-f32 reference mirroring the PyTorch forward.
    x = x.astype(jnp.float32)
    h = x @ w2.T + b2
    h = jnp.where(h > 0, h, jnp.expm1(h))            # ELU
    a = h @ w1.T + b1
    y = x + a
    mean = jnp.mean(y, axis=-1, keepdims=True)
    var = jnp.mean((y - mean) ** 2, axis=-1, keepdims=True)
    return (y - mean) * jax.lax.rsqrt(var + 1e-5) * gamma + beta


def _reference_matched(x, w1, b1, w2, b2, gamma, beta):
    # Mirrors the kernel's precision strategy: bf16 matmul operands, f32 accumulate/LN.
    xf = x.astype(jnp.float32)
    xb = x.astype(jnp.bfloat16)
    h = jnp.matmul(xb, w2.T.astype(jnp.bfloat16),
                   preferred_element_type=jnp.float32) + b2
    h = jnp.where(h > 0, h, jnp.expm1(h))
    a = jnp.matmul(h.astype(jnp.bfloat16), w1.T.astype(jnp.bfloat16),
                   preferred_element_type=jnp.float32) + b1
    y = xf + a
    mean = jnp.mean(y, axis=-1, keepdims=True)
    var = jnp.mean((y - mean) ** 2, axis=-1, keepdims=True)
    return (y - mean) * jax.lax.rsqrt(var + 1e-5) * gamma + beta


if __name__ == "__main__":
    D = 128  # n_feats
    key = jax.random.PRNGKey(0)
    kx, kx2, k1w, k1b, k2w, k2b = jax.random.split(key, 6)

    # PyTorch nn.Linear default init: uniform(-1/sqrt(in), 1/sqrt(in)).
    bound = 1.0 / (D ** 0.5)
    w1 = jax.random.uniform(k1w, (D, D), jnp.float32, -bound, bound)
    b1 = jax.random.uniform(k1b, (D,), jnp.float32, -bound, bound)
    w2 = jax.random.uniform(k2w, (D, D), jnp.float32, -bound, bound)
    b2 = jax.random.uniform(k2b, (D,), jnp.float32, -bound, bound)
    # nn.LayerNorm defaults: weight=1, bias=0.
    gamma = jnp.ones((D,), jnp.float32)
    beta = jnp.zeros((D,), jnp.float32)

    # 1) f32 activations, even token count (2 grid steps -> both v7x TCs usable).
    B, S = 2, 8
    x = jax.random.normal(kx, (B, S, D), dtype=jnp.float32)
    out = jax.block_until_ready(ffn_layer(x, w1, b1, w2, b2, gamma, beta))
    assert out.shape == (B, S, D) and out.dtype == jnp.float32
    assert jnp.allclose(out, _reference_matched(x, w1, b1, w2, b2, gamma, beta),
                        atol=1e-3, rtol=1e-3)
    assert jnp.allclose(out, _reference_f32(x, w1, b1, w2, b2, gamma, beta),
                        atol=5e-2, rtol=5e-2)

    # 2) token count not divisible by the tile: exercises cdiv + zero-padding path.
    B2, S2 = 2, 7
    x2 = jax.random.normal(kx2, (B2, S2, D), dtype=jnp.float32)
    out2 = jax.block_until_ready(ffn_layer(x2, w1, b1, w2, b2, gamma, beta))
    assert out2.shape == (B2, S2, D)
    assert jnp.allclose(out2, _reference_matched(x2, w1, b1, w2, b2, gamma, beta),
                        atol=1e-3, rtol=1e-3)

    # 3) bf16 activation streaming (halves input/output HBM bytes on a mem-bound kernel).
    x_bf16 = x.astype(jnp.bfloat16)
    out_bf = jax.block_until_ready(ffn_layer(x_bf16, w1, b1, w2, b2, gamma, beta))
    assert out_bf.shape == (B, S, D) and out_bf.dtype == jnp.bfloat16
    assert jnp.allclose(out_bf.astype(jnp.float32),
                        _reference_f32(x, w1, b1, w2, b2, gamma, beta),
                        atol=1e-1, rtol=1e-1)

    print("KERNEL_OK")
</pallas_src>

<mosaic_0001>
module attributes {stable_mosaic.version = 11 : i64} {
  func.func @ffn_kernel(%arg0: i32, %arg1: memref<8x128xf32, #tpu.memory_space<vmem>>, %arg2: memref<128x128xbf16, #tpu.memory_space<vmem>>, %arg3: memref<1x128xf32, #tpu.memory_space<vmem>>, %arg4: memref<128x128xbf16, #tpu.memory_space<vmem>>, %arg5: memref<1x128xf32, #tpu.memory_space<vmem>>, %arg6: memref<1x128xf32, #tpu.memory_space<vmem>>, %arg7: memref<1x128xf32, #tpu.memory_space<vmem>>, %arg8: memref<8x128xf32, #tpu.memory_space<vmem>>) attributes {dimension_semantics = [#tpu.dimension_semantics<parallel>], iteration_bounds = array<i64: 2>, scalar_prefetch = 0 : i64, scratch_operands = 0 : i64, tpu.core_type = #tpu.core_type<tc>, window_params = [{transform_indices = @transform_0, window_bounds = array<i64: 8, 128>}, {pipeline_mode = #tpu.pipeline_mode<synchronous>, transform_indices = @transform_1, window_bounds = array<i64: 128, 128>}, {pipeline_mode = #tpu.pipeline_mode<synchronous>, transform_indices = @transform_2, window_bounds = array<i64: 1, 128>}, {pipeline_mode = #tpu.pipeline_mode<synchronous>, transform_indices = @transform_3, window_bounds = array<i64: 128, 128>}, {pipeline_mode = #tpu.pipeline_mode<synchronous>, transform_indices = @transform_4, window_bounds = array<i64: 1, 128>}, {pipeline_mode = #tpu.pipeline_mode<synchronous>, transform_indices = @transform_5, window_bounds = array<i64: 1, 128>}, {pipeline_mode = #tpu.pipeline_mode<synchronous>, transform_indices = @transform_6, window_bounds = array<i64: 1, 128>}, {transform_indices = @transform_7, window_bounds = array<i64: 8, 128>}]} {
    %c0 = arith.constant 0 : index
    %c0_0 = arith.constant 0 : index
    %0 = vector.load %arg1[%c0, %c0_0] : memref<8x128xf32, #tpu.memory_space<vmem>>, vector<8x128xf32>
    %c0_1 = arith.constant 0 : index
    %c0_2 = arith.constant 0 : index
    %1 = vector.load %arg1[%c0_1, %c0_2] : memref<8x128xf32, #tpu.memory_space<vmem>>, vector<8x128xf32>
    %2 = arith.truncf %1 : vector<8x128xf32> to vector<8x128xbf16>
    %c0_3 = arith.constant 0 : index
    %c0_4 = arith.constant 0 : index
    %3 = vector.load %arg2[%c0_3, %c0_4] : memref<128x128xbf16, #tpu.memory_space<vmem>>, vector<128x128xbf16>
    %cst = arith.constant dense<0.000000e+00> : vector<8x128xf32>
    %4 = tpu.matmul %2, %3, %cst {dimension_numbers = #tpu.dot_dimension_numbers<[1], [0], [0], [1], [0, 0, 1, 1], [], []>} : vector<8x128xbf16>, vector<128x128xbf16>, vector<8x128xf32> -> vector<8x128xf32>
    %c0_5 = arith.constant 0 : index
    %c0_6 = arith.constant 0 : index
    %5 = vector.load %arg3[%c0_5, %c0_6] : memref<1x128xf32, #tpu.memory_space<vmem>>, vector<1x128xf32>
    %6 = vector.broadcast %5 : vector<1x128xf32> to vector<8x128xf32>
    %7 = arith.addf %4, %6 : vector<8x128xf32>
    %8 = math.exp %7 : vector<8x128xf32>
    %cst_7 = arith.constant 1.000000e+00 : f32
    %9 = vector.broadcast %cst_7 : f32 to vector<8x128xf32>
    %10 = arith.subf %8, %9 : vector<8x128xf32>
    %cst_8 = arith.constant 0.000000e+00 : f32
    %11 = vector.broadcast %cst_8 : f32 to vector<8x128xf32>
    %12 = arith.cmpf ogt, %7, %11 : vector<8x128xf32>
    %13 = arith.select %12, %7, %10 : vector<8x128xi1>, vector<8x128xf32>
    %14 = arith.truncf %13 : vector<8x128xf32> to vector<8x128xbf16>
    %c0_9 = arith.constant 0 : index
    %c0_10 = arith.constant 0 : index
    %15 = vector.load %arg4[%c0_9, %c0_10] : memref<128x128xbf16, #tpu.memory_space<vmem>>, vector<128x128xbf16>
    %cst_11 = arith.constant dense<0.000000e+00> : vector<8x128xf32>
    %16 = tpu.matmul %14, %15, %cst_11 {dimension_numbers = #tpu.dot_dimension_numbers<[1], [0], [0], [1], [0, 0, 1, 1], [], []>} : vector<8x128xbf16>, vector<128x128xbf16>, vector<8x128xf32> -> vector<8x128xf32>
    %c0_12 = arith.constant 0 : index
    %c0_13 = arith.constant 0 : index
    %17 = vector.load %arg5[%c0_12, %c0_13] : memref<1x128xf32, #tpu.memory_space<vmem>>, vector<1x128xf32>
    %18 = vector.broadcast %17 : vector<1x128xf32> to vector<8x128xf32>
    %19 = arith.addf %16, %18 : vector<8x128xf32>
    %20 = arith.addf %0, %19 : vector<8x128xf32>
    %cst_14 = arith.constant dense<0.000000e+00> : vector<8xf32>
    %21 = vector.multi_reduction <add>, %20, %cst_14 [1] : vector<8x128xf32> to vector<8xf32>
    %22 = vector.shape_cast %21 : vector<8xf32> to vector<8x1xf32>
    %cst_15 = arith.constant 1.280000e+02 : f32
    %23 = vector.broadcast %cst_15 : f32 to vector<8x1xf32>
    %24 = arith.divf %22, %23 : vector<8x1xf32>
    %25 = vector.broadcast %24 : vector<8x1xf32> to vector<8x128xf32>
    %26 = arith.subf %20, %25 : vector<8x128xf32>
    %27 = arith.mulf %26, %26 : vector<8x128xf32>
    %cst_16 = arith.constant dense<0.000000e+00> : vector<8xf32>
    %28 = vector.multi_reduction <add>, %27, %cst_16 [1] : vector<8x128xf32> to vector<8xf32>
    %29 = vector.shape_cast %28 : vector<8xf32> to vector<8x1xf32>
    %cst_17 = arith.constant 1.280000e+02 : f32
    %30 = vector.broadcast %cst_17 : f32 to vector<8x1xf32>
    %31 = arith.divf %29, %30 : vector<8x1xf32>
    %32 = vector.broadcast %24 : vector<8x1xf32> to vector<8x128xf32>
    %33 = arith.subf %20, %32 : vector<8x128xf32>
    %cst_18 = arith.constant 9.99999974E-6 : f32
    %34 = vector.broadcast %cst_18 : f32 to vector<8x1xf32>
    %35 = arith.addf %31, %34 : vector<8x1xf32>
    %36 = math.rsqrt %35 : vector<8x1xf32>
    %37 = vector.broadcast %36 : vector<8x1xf32> to vector<8x128xf32>
    %38 = arith.mulf %33, %37 : vector<8x128xf32>
    %c0_19 = arith.constant 0 : index
    %c0_20 = arith.constant 0 : index
    %39 = vector.load %arg6[%c0_19, %c0_20] : memref<1x128xf32, #tpu.memory_space<vmem>>, vector<1x128xf32>
    %40 = vector.broadcast %39 : vector<1x128xf32> to vector<8x128xf32>
    %41 = arith.mulf %38, %40 : vector<8x128xf32>
    %c0_21 = arith.constant 0 : index
    %c0_22 = arith.constant 0 : index
    %42 = vector.load %arg7[%c0_21, %c0_22] : memref<1x128xf32, #tpu.memory_space<vmem>>, vector<1x128xf32>
    %43 = vector.broadcast %42 : vector<1x128xf32> to vector<8x128xf32>
    %44 = arith.addf %41, %43 : vector<8x128xf32>
    %c0_23 = arith.constant 0 : index
    %c0_24 = arith.constant 0 : index
    %45 = vector.load %arg8[%c0_23, %c0_24] : memref<8x128xf32, #tpu.memory_space<vmem>>, vector<8x128xf32>
    tpu.vector_store %arg8[%c0_23, %c0_24], %44 {strides = array<i32>} : memref<8x128xf32, #tpu.memory_space<vmem>>, vector<8x128xf32>,
    return
  }
  func.func @transform_0(%arg0: i32) -> (i32, i32) {
    %c0_i32 = arith.constant 0 : i32
    %c0_i32_0 = arith.constant 0 : i32
    return %arg0, %c0_i32 : i32, i32
  }
  func.func @transform_1(%arg0: i32) -> (i32, i32) {
    %c0_i32 = arith.constant 0 : i32
    %c0_i32_0 = arith.constant 0 : i32
    %c0_i32_1 = arith.constant 0 : i32
    return %c0_i32, %c0_i32_0 : i32, i32
  }
  func.func @transform_2(%arg0: i32) -> (i32, i32) {
    %c0_i32 = arith.constant 0 : i32
    %c0_i32_0 = arith.constant 0 : i32
    %c0_i32_1 = arith.constant 0 : i32
    return %c0_i32, %c0_i32_0 : i32, i32
  }
  func.func @transform_3(%arg0: i32) -> (i32, i32) {
    %c0_i32 = arith.constant 0 : i32
    %c0_i32_0 = arith.constant 0 : i32
    %c0_i32_1 = arith.constant 0 : i32
    return %c0_i32, %c0_i32_0 : i32, i32
  }
  func.func @transform_4(%arg0: i32) -> (i32, i32) {
    %c0_i32 = arith.constant 0 : i32
    %c0_i32_0 = arith.constant 0 : i32
    %c0_i32_1 = arith.constant 0 : i32
    return %c0_i32, %c0_i32_0 : i32, i32
  }
  func.func @transform_5(%arg0: i32) -> (i32, i32) {
    %c0_i32 = arith.constant 0 : i32
    %c0_i32_0 = arith.constant 0 : i32
    %c0_i32_1 = arith.constant 0 : i32
    return %c0_i32, %c0_i32_0 : i32, i32
  }
  func.func @transform_6(%arg0: i32) -> (i32, i32) {
    %c0_i32 = arith.constant 0 : i32
    %c0_i32_0 = arith.constant 0 : i32
    %c0_i32_1 = arith.constant 0 : i32
    return %c0_i32, %c0_i32_0 : i32, i32
  }
  func.func @transform_7(%arg0: i32) -> (i32, i32) {
    %c0_i32 = arith.constant 0 : i32
    %c0_i32_0 = arith.constant 0 : i32
    return %arg0, %c0_i32 : i32, i32
  }
}

</mosaic_0001>

<llo_original>
// kernel: tpu_custom_call.1
$region0: #{tpu_custom_call.1}
  #allocation0 [shape = 'u32[]', space=smem, size = 0x4, offset = 0x4, fixed_abs, tag = 'smem constant byte address 0x4 - core index']
  #allocation1 [shape = 'u32[144,128]{1,0:T(1,128)}', space=vmem, size = 0x12000, scoped, tag = 'internal scratch']
  %s0 = inlined_call_operand.hbm [shape: f32[16,128], index: 0, kind: input, shape index: {}]
  %s1 = inlined_call_operand.hbm [shape: bf16[128,128], index: 1, kind: input, shape index: {}]
  %s2 = inlined_call_operand.vmem [shape: f32[1,128], index: 2, kind: input, shape index: {}]
  %s3 = inlined_call_operand.hbm [shape: bf16[128,128], index: 3, kind: input, shape index: {}]
  %s4 = inlined_call_operand.vmem [shape: f32[1,128], index: 4, kind: input, shape index: {}]
  %s5 = inlined_call_operand.vmem [shape: f32[1,128], index: 5, kind: input, shape index: {}]
  %s6 = inlined_call_operand.vmem [shape: f32[1,128], index: 6, kind: input, shape index: {}]
  %s7 = inlined_call_operand.hbm [shape: f32[16,128], index: 7, kind: output, shape index: {}]
  %s8 = sld [smem:[#allocation0]]
  $region73: #{tpu_custom_call.1} parent=0
    _
  %s10 = ssub.s32 1, %s8
  %s11 = scalar_select 0, %s10, %s8
  $region1: #{tpu_custom_call.1} parent=0
    #allocation2 [shape = 'u8[8192]{0}', space=vmem, size = 0x2000, scoped, tag = 'input window, operand 0']
    #allocation3 [shape = 's32[2]{0}', space=sflag, size = 0x8, scoped, tag = 'scoped memory for tpu_custom_call.1']
    #allocation4 [shape = 's32[2]{0}', space=sflag, size = 0x8, scoped, tag = 'scoped memory for tpu_custom_call.1']
    #allocation5 [shape = 'u8[32768]{0}', space=vmem, size = 0x8000, scoped, tag = 'input window, operand 1, single buffered']
    #allocation6 [shape = 's32[1]{0}', space=sflag, size = 0x4, scoped, tag = 'scoped memory for tpu_custom_call.1']
    #allocation7 [shape = 'u8[32768]{0}', space=vmem, size = 0x8000, scoped, tag = 'input window, operand 3, single buffered']
    #allocation8 [shape = 'u8[8192]{0}', space=vmem, size = 0x2000, scoped, tag = 'output window, operand 0']
    %12 = vsyncpa [#allocation3], 0
    %s13 = scalar_lea.sflag [#allocation3], 1
    %14 = vsyncpa %s13, 0
    %15 = vsyncpa [#allocation6], 0
    %16 = vsyncpa [#allocation4], 0
    %s17 = scalar_lea.sflag [#allocation4], 1
    %18 = vsyncpa %s17, 0
    loop: start=0, step=1, limit=4
    $region2: #{tpu_custom_call.1} parent=1 // loop_pre_header
      _
    $region3: #{tpu_custom_call.1} parent=1 // loop_header
      %s20 = sphi 0, %s24
      %p21 = scmp.ge.s32.totalorder %s20, 4
      %s30 = sphi 0, %s32
      %s33 = sphi 0, %s30
      %s34 = sphi 0, %s33
      %s50 = sphi 0, %s34
      %s54 = sphi 0, %s54
      %s56 = sphi 0, %s54
      %s57 = sphi 0, %s56
      %s71 = sphi 0, %s57
      %s75 = sphi 0, %s75
      %s77 = sphi 0, %s75
      %s78 = sphi 0, %s77
      %s92 = sphi 0, %s78
      %s96 = sphi 0, %s96
      %s98 = sphi 0, %s96
      %s99 = sphi 0, %s98
      %s113 = sphi 0, %s99
      %s117 = sphi 0, %s117
      %s119 = sphi 0, %s117
      %s120 = sphi 0, %s119
      %s134 = sphi 0, %s120
      %s138 = sphi 0, %s138
      %s140 = sphi 0, %s138
      %s141 = sphi 0, %s140
      %s155 = sphi 0, %s141
      %s159 = sphi 0, %s159
      %s161 = sphi 0, %s159
      %s162 = sphi 0, %s161
      %s176 = sphi 0, %s162
      %s182 = sphi 0, %s184
      %s185 = sphi 0, %s182
      %s186 = sphi 0, %s185
      %s202 = sphi 0, %s186
    $region4: #{tpu_custom_call.1} parent=1 // loop_header_branch
      %23 = sbr.rel (%p21) target = $region8
    $region5: #{tpu_custom_call.1} parent=1 // loop_body
      %s25 = ssub.s32 %s20, 1
      %s26 = ssub.s32 %s20, 2
      %s27 = sadd.s32 %s20, 1
      %s28 = ssub.s32 %s20, %s27
      %p29 = scmp.eq.s32.totalorder %s28, 0
      %s31 = sadd.s32 %s30, 1
      %s32 = scalar_select %p29, %s30, %s31
      %p35 = pneg %p29
      %p36 = scmp.eq.s32.totalorder %s20, 1
      %p37 = por %p35, %p36
      %p38 = scmp.ne.s32.totalorder %s30, %s33
      %p39 = scmp.eq.s32.totalorder %s20, 0
      %p40 = por %p38, %p39
      %p41 = scmp.ne.s32.totalorder %s30, %s33
      %p42 = scmp.eq.s32.totalorder %s25, 1
      %p43 = por %p41, %p42
      %p44 = scmp.ne.s32.totalorder %s33, %s34
      %p45 = scmp.eq.s32.totalorder %s25, 0
      %p46 = por %p44, %p45
      %p47 = scmp.ne.s32.totalorder %s33, %s34
      %p48 = scmp.eq.s32.totalorder %s26, 1
      %p49 = por %p47, %p48
      %p51 = scmp.ne.s32.totalorder %s34, %s50
      %p52 = scmp.eq.s32.totalorder %s26, 0
      %p53 = por %p51, %p52
      %s55 = sadd.s32 %s54, 1
      %p58 = scmp.eq.s32.totalorder %s20, 1
      %p59 = scmp.ne.s32.totalorder %s54, %s56
      %p60 = scmp.eq.s32.totalorder %s20, 0
      %p61 = por %p59, %p60
      %p62 = scmp.ne.s32.totalorder %s54, %s56
      %p63 = scmp.eq.s32.totalorder %s25, 1
      %p64 = por %p62, %p63
      %p65 = scmp.ne.s32.totalorder %s56, %s57
      %p66 = scmp.eq.s32.totalorder %s25, 0
      %p67 = por %p65, %p66
      %p68 = scmp.ne.s32.totalorder %s56, %s57
      %p69 = scmp.eq.s32.totalorder %s26, 1
      %p70 = por %p68, %p69
      %p72 = scmp.ne.s32.totalorder %s57, %s71
      %p73 = scmp.eq.s32.totalorder %s26, 0
      %p74 = por %p72, %p73
      %s76 = sadd.s32 %s75, 1
      %p79 = scmp.eq.s32.totalorder %s20, 1
      %p80 = scmp.ne.s32.totalorder %s75, %s77
      %p81 = scmp.eq.s32.totalorder %s20, 0
      %p82 = por %p80, %p81
      %p83 = scmp.ne.s32.totalorder %s75, %s77
      %p84 = scmp.eq.s32.totalorder %s25, 1
      %p85 = por %p83, %p84
      %p86 = scmp.ne.s32.totalorder %s77, %s78
      %p87 = scmp.eq.s32.totalorder %s25, 0
      %p88 = por %p86, %p87
      %p89 = scmp.ne.s32.totalorder %s77, %s78
      %p90 = scmp.eq.s32.totalorder %s26, 1
      %p91 = por %p89, %p90
      %p93 = scmp.ne.s32.totalorder %s78, %s92
      %p94 = scmp.eq.s32.totalorder %s26, 0
      %p95 = por %p93, %p94
      %s97 = sadd.s32 %s96, 1
      %p100 = scmp.eq.s32.totalorder %s20, 1
      %p101 = scmp.ne.s32.totalorder %s96, %s98
      %p102 = scmp.eq.s32.totalorder %s20, 0
      %p103 = por %p101, %p102
      %p104 = scmp.ne.s32.totalorder %s96, %s98
      %p105 = scmp.eq.s32.totalorder %s25, 1
      %p106 = por %p104, %p105
      %p107 = scmp.ne.s32.totalorder %s98, %s99
      %p108 = scmp.eq.s32.totalorder %s25, 0
      %p109 = por %p107, %p108
      %p110 = scmp.ne.s32.totalorder %s98, %s99
      %p111 = scmp.eq.s32.totalorder %s26, 1
      %p112 = por %p110, %p111
      %p114 = scmp.ne.s32.totalorder %s99, %s113
      %p115 = scmp.eq.s32.totalorder %s26, 0
      %p116 = por %p114, %p115
      %s118 = sadd.s32 %s117, 1
      %p121 = scmp.eq.s32.totalorder %s20, 1
      %p122 = scmp.ne.s32.totalorder %s117, %s119
      %p123 = scmp.eq.s32.totalorder %s20, 0
      %p124 = por %p122, %p123
      %p125 = scmp.ne.s32.totalorder %s117, %s119
      %p126 = scmp.eq.s32.totalorder %s25, 1
      %p127 = por %p125, %p126
      %p128 = scmp.ne.s32.totalorder %s119, %s120
      %p129 = scmp.eq.s32.totalorder %s25, 0
      %p130 = por %p128, %p129
      %p131 = scmp.ne.s32.totalorder %s119, %s120
      %p132 = scmp.eq.s32.totalorder %s26, 1
      %p133 = por %p131, %p132
      %p135 = scmp.ne.s32.totalorder %s120, %s134
      %p136 = scmp.eq.s32.totalorder %s26, 0
      %p137 = por %p135, %p136
      %s139 = sadd.s32 %s138, 1
      %p142 = scmp.eq.s32.totalorder %s20, 1
      %p143 = scmp.ne.s32.totalorder %s138, %s140
      %p144 = scmp.eq.s32.totalorder %s20, 0
      %p145 = por %p143, %p144
      %p146 = scmp.ne.s32.totalorder %s138, %s140
      %p147 = scmp.eq.s32.totalorder %s25, 1
      %p148 = por %p146, %p147
      %p149 = scmp.ne.s32.totalorder %s140, %s141
      %p150 = scmp.eq.s32.totalorder %s25, 0
      %p151 = por %p149, %p150
      %p152 = scmp.ne.s32.totalorder %s140, %s141
      %p153 = scmp.eq.s32.totalorder %s26, 1
      %p154 = por %p152, %p153
      %p156 = scmp.ne.s32.totalorder %s141, %s155
      %p157 = scmp.eq.s32.totalorder %s26, 0
      %p158 = por %p156, %p157
      %s160 = sadd.s32 %s159, 1
      %p163 = scmp.eq.s32.totalorder %s20, 1
      %p164 = scmp.ne.s32.totalorder %s159, %s161
      %p165 = scmp.eq.s32.totalorder %s20, 0
      %p166 = por %p164, %p165
      %p167 = scmp.ne.s32.totalorder %s159, %s161
      %p168 = scmp.eq.s32.totalorder %s25, 1
      %p169 = por %p167, %p168
      %p170 = scmp.ne.s32.totalorder %s161, %s162
      %p171 = scmp.eq.s32.totalorder %s25, 0
      %p172 = por %p170, %p171
      %p173 = scmp.ne.s32.totalorder %s161, %s162
      %p174 = scmp.eq.s32.totalorder %s26, 1
      %p175 = por %p173, %p174
      %p177 = scmp.ne.s32.totalorder %s162, %s176
      %p178 = scmp.eq.s32.totalorder %s26, 0
      %p179 = por %p177, %p178
      %s180 = ssub.s32 %s20, %s27
      %p181 = scmp.eq.s32.totalorder %s180, 0
      %s183 = sadd.s32 %s182, 1
      %s184 = scalar_select %p181, %s182, %s183
      %p187 = pneg %p181
      %p188 = scmp.eq.s32.totalorder %s20, 1
      %p189 = por %p187, %p188
      %p190 = scmp.ne.s32.totalorder %s182, %s185
      %p191 = scmp.eq.s32.totalorder %s20, 0
      %p192 = por %p190, %p191
      %p193 = scmp.ne.s32.totalorder %s182, %s185
      %p194 = scmp.eq.s32.totalorder %s25, 1
      %p195 = por %p193, %p194
      %p196 = scmp.ne.s32.totalorder %s185, %s186
      %p197 = scmp.eq.s32.totalorder %s25, 0
      %p198 = por %p196, %p197
      %p199 = scmp.ne.s32.totalorder %s185, %s186
      %p200 = scmp.eq.s32.totalorder %s26, 1
      %p201 = por %p199, %p200
      %p203 = scmp.ne.s32.totalorder %s186, %s202
      %p204 = scmp.eq.s32.totalorder %s26, 0
      %p205 = por %p203, %p204
      %p206 = scmp.le.s32.totalorder 1, %s20
      %p207 = scmp.lt.s32.totalorder %s20, 3
      %p208 = pnand %p206, %p207
      %p209 = pneg %p208
      // Predicated region
      $region9: #{tpu_custom_call.1} parent=5 // pred_check
        _
      $region10: #{tpu_custom_call.1} parent=5 // pred_check_branch
        %211 = sbr.rel (%p208) target = $region12
      $region11: #{tpu_custom_call.1} parent=5 // pred_region
        %s212 = ssub.s32 %s20, 1
        // Predicated region
        $region13: #{tpu_custom_call.1} parent=11 // pred_check
          %p213 = pneg %p67
        $region14: #{tpu_custom_call.1} parent=11 // pred_check_branch
          %215 = sbr.rel (%p213) target = $region16
        $region15: #{tpu_custom_call.1} parent=11 // pred_region
          %s217 = ssub.s32 1024, 1024
          %218 = vsyncadd [#allocation6], %s217
          %s219 = sshll.u32 [#allocation5], 4
          %s220 = int_to_ptr.vmem [resolvable:$true] %s219
          %225 = dma.hbm_to_vmem [thread:$0]  %s1, 1024, %s220, [#allocation6], 64, 64, 4
        $region16: #{tpu_custom_call.1} parent=11 // pred_fallthru
          _
        // Predicated region
        $region17: #{tpu_custom_call.1} parent=11 // pred_check
          %p226 = pneg %p88
        $region18: #{tpu_custom_call.1} parent=11 // pred_check_branch
          %228 = sbr.rel (%p226) target = $region20
        $region19: #{tpu_custom_call.1} parent=11 // pred_region
          _
        $region20: #{tpu_custom_call.1} parent=11 // pred_fallthru
          _
        // Predicated region
        $region21: #{tpu_custom_call.1} parent=11 // pred_check
          %p229 = pneg %p109
        $region22: #{tpu_custom_call.1} parent=11 // pred_check_branch
          %231 = sbr.rel (%p229) target = $region24
        $region23: #{tpu_custom_call.1} parent=11 // pred_region
          %s233 = ssub.s32 1024, 1024
          %234 = vsyncadd [#allocation6], %s233
          %s235 = sshll.u32 [#allocation7], 4
          %s236 = int_to_ptr.vmem [resolvable:$true] %s235
          %241 = dma.hbm_to_vmem [thread:$0]  %s3, 1024, %s236, [#allocation6], 64, 64, 4
        $region24: #{tpu_custom_call.1} parent=11 // pred_fallthru
          _
        // Predicated region
        $region25: #{tpu_custom_call.1} parent=11 // pred_check
          %p242 = pneg %p130
        $region26: #{tpu_custom_call.1} parent=11 // pred_check_branch
          %244 = sbr.rel (%p242) target = $region28
        $region27: #{tpu_custom_call.1} parent=11 // pred_region
          _
        $region28: #{tpu_custom_call.1} parent=11 // pred_fallthru
          _
        // Predicated region
        $region29: #{tpu_custom_call.1} parent=11 // pred_check
          %p245 = pneg %p151
        $region30: #{tpu_custom_call.1} parent=11 // pred_check_branch
          %247 = sbr.rel (%p245) target = $region32
        $region31: #{tpu_custom_call.1} parent=11 // pred_region
          _
        $region32: #{tpu_custom_call.1} parent=11 // pred_fallthru
          _
        // Predicated region
        $region33: #{tpu_custom_call.1} parent=11 // pred_check
          %p248 = pneg %p172
        $region34: #{tpu_custom_call.1} parent=11 // pred_check_branch
          %250 = sbr.rel (%p248) target = $region36
        $region35: #{tpu_custom_call.1} parent=11 // pred_region
          _
        $region36: #{tpu_custom_call.1} parent=11 // pred_fallthru
          _
      $region12: #{tpu_custom_call.1} parent=5 // pred_fallthru
        _
      %p251 = scmp.lt.s32.totalorder %s20, 2
      // Predicated region
      $region37: #{tpu_custom_call.1} parent=5 // pred_check
        %p252 = pneg %p251
      $region38: #{tpu_custom_call.1} parent=5 // pred_check_branch
        %254 = sbr.rel (%p252) target = $region40
      $region39: #{tpu_custom_call.1} parent=5 // pred_region
        // Predicated region
        $region41: #{tpu_custom_call.1} parent=39 // pred_check
          %p255 = pneg %p40
        $region42: #{tpu_custom_call.1} parent=39 // pred_check_branch
          %257 = sbr.rel (%p255) target = $region44
        $region43: #{tpu_custom_call.1} parent=39 // pred_region
          %s258 = sand.u32 %s30, 1
          %s259 = scalar_lea.sflag [#allocation3], %s258
          %s260 = sand.u32 %s30, 1
          %s261 = smul.addr %s260, 8
          %s262 = scalar_lea.vmem [#allocation2], %s261
          %s264 = ssub.s32 128, 128
          %265 = vsyncadd %s259, %s264
          %s266 = smul.addr %s20, 128
          %s267 = scalar_lea.hbm %s0, %s266
          %s269 = sshll.u32 %s262, 4
          %s270 = int_to_ptr.vmem [resolvable:$true] %s269
          %272 = dma.hbm_to_vmem [thread:$0]  %s267, 128, %s270, %s259
        $region44: #{tpu_custom_call.1} parent=39 // pred_fallthru
          _
      $region40: #{tpu_custom_call.1} parent=5 // pred_fallthru
        _
      %p273 = scmp.le.s32.totalorder 1, %s20
      %p274 = scmp.lt.s32.totalorder %s20, 3
      %p275 = pnand %p273, %p274
      %p276 = pneg %p275
      // Predicated region
      $region45: #{tpu_custom_call.1} parent=5 // pred_check
        _
      $region46: #{tpu_custom_call.1} parent=5 // pred_check_branch
        %278 = sbr.rel (%p275) target = $region48
      $region47: #{tpu_custom_call.1} parent=5 // pred_region
        %s279 = ssub.s32 %s20, 1
        %s280 = sand.u32 %s33, 1
        %s281 = scalar_lea.sflag [#allocation3], %s280
        %s282 = sand.u32 %s33, 1
        %s283 = smul.addr %s282, 8
        %s284 = scalar_lea.vmem [#allocation2], %s283
        // Predicated region
        $region49: #{tpu_custom_call.1} parent=47 // pred_check
          %p285 = pneg %p46
        $region50: #{tpu_custom_call.1} parent=47 // pred_check_branch
          %287 = sbr.rel (%p285) target = $region52
        $region51: #{tpu_custom_call.1} parent=47 // pred_region
          %288 = dma.done %s281, 128
        $region52: #{tpu_custom_call.1} parent=47 // pred_fallthru
          _
        // Predicated region
        $region53: #{tpu_custom_call.1} parent=47 // pred_check
          %p289 = pneg %p67
        $region54: #{tpu_custom_call.1} parent=47 // pred_check_branch
          %291 = sbr.rel (%p289) target = $region56
        $region55: #{tpu_custom_call.1} parent=47 // pred_region
          %292 = dma.done [#allocation6], 1024
        $region56: #{tpu_custom_call.1} parent=47 // pred_fallthru
          _
        // Predicated region
        $region57: #{tpu_custom_call.1} parent=47 // pred_check
          %p293 = pneg %p109
        $region58: #{tpu_custom_call.1} parent=47 // pred_check_branch
          %295 = sbr.rel (%p293) target = $region60
        $region59: #{tpu_custom_call.1} parent=47 // pred_region
          %296 = dma.done [#allocation6], 1024
        $region60: #{tpu_custom_call.1} parent=47 // pred_fallthru
          _
        %s297 = sand.u32 %s33, 1
        %s298 = scalar_lea.sflag [#allocation3], %s297
        %s299 = sand.u32 %s33, 1
        %s300 = smul.addr %s299, 8
        %s301 = scalar_lea.vmem [#allocation2], %s300
        %p302 = pneg %p46
        %p303 = pneg %p43
        %p304 = pneg %p67
        %p305 = pneg %p64
        %p306 = pneg %p88
        %p307 = pneg %p85
        %p308 = pneg %p109
        %p309 = pneg %p106
        %p310 = pneg %p130
        %p311 = pneg %p127
        %p312 = pneg %p151
        %p313 = pneg %p148
        %p314 = pneg %p172
        %p315 = pneg %p169
        %p316 = pneg %p198
        %p317 = pneg %p195
        %s318 = sand.u32 %s185, 1
        %s319 = scalar_lea.sflag [#allocation4], %s318
        %s320 = sand.u32 %s185, 1
        %s321 = smul.addr %s320, 8
        %s322 = scalar_lea.vmem [#allocation8], %s321
        %v324 = vld [vmem:[%s284] sm:$0xff]
        %v325 = vpack.c.bf16 %v324, %v324
        %v326 = vld [vmem:[#allocation5] sm:$0xf]
        %v327 = vld [vmem:[#allocation5 + $0x4] sm:$0xf]
        %v328 = vld [vmem:[#allocation5 + $0x8] sm:$0xf]
        %v329 = vld [vmem:[#allocation5 + $0xc] sm:$0xf]
        %v330 = vld [vmem:[#allocation5 + $0x10] sm:$0xf]
        %v331 = vld [vmem:[#allocation5 + $0x14] sm:$0xf]
        %v332 = vld [vmem:[#allocation5 + $0x18] sm:$0xf]
        %v333 = vld [vmem:[#allocation5 + $0x1c] sm:$0xf]
        %v334 = vld [vmem:[#allocation5 + $0x20] sm:$0xf]
        %v335 = vld [vmem:[#allocation5 + $0x24] sm:$0xf]
        %v336 = vld [vmem:[#allocation5 + $0x28] sm:$0xf]
        %v337 = vld [vmem:[#allocation5 + $0x2c] sm:$0xf]
        %v338 = vld [vmem:[#allocation5 + $0x30] sm:$0xf]
        %v339 = vld [vmem:[#allocation5 + $0x34] sm:$0xf]
        %v340 = vld [vmem:[#allocation5 + $0x38] sm:$0xf]
        %v341 = vld [vmem:[#allocation5 + $0x3c] sm:$0xf]
        %v342 = vld [vmem:[%s2] sm:$0x1]
        %v344 = vlaneseq
        %v345 = vshrl.u32 %v344, 7
        %v346 = vsub.s32 0, %v345
        %v347 = vrot.slane %v342, %v346
        %v365 = vunpack.c.l.b16 %v326
        %v366 = vunpack.c.l.b16 %v327
        %v367 = vunpack.c.l.b16 %v328
        %v368 = vunpack.c.l.b16 %v329
        %v369 = vunpack.c.l.b16 %v330
        %v370 = vunpack.c.l.b16 %v331
        %v371 = vunpack.c.l.b16 %v332
        %v372 = vunpack.c.l.b16 %v333
        %v373 = vunpack.c.l.b16 %v334
        %v374 = vunpack.c.l.b16 %v335
        %v375 = vunpack.c.l.b16 %v336
        %v376 = vunpack.c.l.b16 %v337
        %v377 = vunpack.c.l.b16 %v338
        %v378 = vunpack.c.l.b16 %v339
        %v379 = vunpack.c.l.b16 %v340
        %v380 = vunpack.c.l.b16 %v341
        %v381 = vpack.c.b16 %v366, %v365
        %v382 = vpack.c.b16 %v368, %v367
        %v383 = vpack.c.b16 %v370, %v369
        %v384 = vpack.c.b16 %v372, %v371
        %v385 = vpack.c.b16 %v374, %v373
        %v386 = vpack.c.b16 %v376, %v375
        %v387 = vpack.c.b16 %v378, %v377
        %v388 = vpack.c.b16 %v380, %v379
        %397 = vmatprep.subr.bf16.mxu0 0
        %398 = vmatpush1.bf16.msra.mxu0 %v388
        %399 = vmatprep.subr.bf16.mxu0 0
        %400 = vmatpush1.bf16.msra.mxu0 %v387
        %401 = vmatprep.subr.bf16.mxu0 0
        %402 = vmatpush1.bf16.msra.mxu0 %v386
        %403 = vmatprep.subr.bf16.mxu0 0
        %404 = vmatpush1.bf16.msra.mxu0 %v385
        %405 = vmatprep.subr.bf16.mxu0 0
        %406 = vmatpush1.bf16.msra.mxu0 %v384
        %407 = vmatprep.subr.bf16.mxu0 0
        %408 = vmatpush1.bf16.msra.mxu0 %v383
        %409 = vmatprep.subr.bf16.mxu0 0
        %410 = vmatpush1.bf16.msra.mxu0 %v382
        %411 = vmatprep.subr.bf16.mxu0 0
        %412 = vmatpush1.bf16.msra.mxu0 %v381
        %413 = vmatprep.subr.bf16.mxu0 0
        %414 = vmatpush2.bf16.msra.mxu0 0
        %415 = vmatprep.subr.bf16.mxu0 0
        %416 = vmatpush2.bf16.msra.mxu0 0
        %417 = vmatprep.subr.bf16.mxu0 0
        %418 = vmatpush2.bf16.msra.mxu0 0
        %419 = vmatprep.subr.bf16.mxu0 0
        %420 = vmatpush2.bf16.msra.mxu0 0
        %421 = vmatprep.subr.bf16.mxu0 0
        %422 = vmatpush2.bf16.msra.mxu0 0
        %423 = vmatprep.subr.bf16.mxu0 0
        %424 = vmatpush2.bf16.msra.mxu0 0
        %425 = vmatprep.subr.bf16.mxu0 0
        %426 = vmatpush2.bf16.msra.mxu0 0
        %427 = vmatprep.subr.bf16.mxu0 0
        %428 = vmatpush2.bf16.msra.mxu0 0
        %429 = vmatprep.mubr.bf16.mxu0 0
        %430 = vmatmul.mubr.bf16.gmra.mxu0 %v325
        %v431 = vpop.f32.mrf.mxu0
        %v432 = vadd.f32 %v347, %v431
        %v433 = vpop.f32.mrf.mxu0
        %v434 = vpop.f32.mrf.mxu0
        %v435 = vpop.f32.mrf.mxu0
        %436 = vdwg.mxu0
        %v437 = vmul.f32 %v432, 1.442695
        %v438 = vpow.pop %v437
        %v439 = vsub.f32 %v438, 1.0
        %vm440 = vcmp.gt.f32.partialorder %v432, 0.0
        %v441 = vsel %vm440, %v432, %v439
        %v442 = vpack.c.bf16 %v441, %v441
        %v443 = vld [vmem:[#allocation7] sm:$0xf]
        %v444 = vld [vmem:[#allocation7 + $0x4] sm:$0xf]
        %v445 = vld [vmem:[#allocation7 + $0x8] sm:$0xf]
        %v446 = vld [vmem:[#allocation7 + $0xc] sm:$0xf]
        %v447 = vld [vmem:[#allocation7 + $0x10] sm:$0xf]
        %v448 = vld [vmem:[#allocation7 + $0x14] sm:$0xf]
        %v449 = vld [vmem:[#allocation7 + $0x18] sm:$0xf]
        %v450 = vld [vmem:[#allocation7 + $0x1c] sm:$0xf]
        %v451 = vld [vmem:[#allocation7 + $0x20] sm:$0xf]
        %v452 = vld [vmem:[#allocation7 + $0x24] sm:$0xf]
        %v453 = vld [vmem:[#allocation7 + $0x28] sm:$0xf]
        %v454 = vld [vmem:[#allocation7 + $0x2c] sm:$0xf]
        %v455 = vld [vmem:[#allocation7 + $0x30] sm:$0xf]
        %v456 = vld [vmem:[#allocation7 + $0x34] sm:$0xf]
        %v457 = vld [vmem:[#allocation7 + $0x38] sm:$0xf]
        %v458 = vld [vmem:[#allocation7 + $0x3c] sm:$0xf]
        %v459 = vld [vmem:[%s4] sm:$0x1]
        %v461 = vlaneseq
        %v462 = vshrl.u32 %v461, 7
        %v463 = vsub.s32 0, %v462
        %v464 = vrot.slane %v459, %v463
        %v482 = vunpack.c.l.b16 %v443
        %v483 = vunpack.c.l.b16 %v444
        %v484 = vunpack.c.l.b16 %v445
        %v485 = vunpack.c.l.b16 %v446
        %v486 = vunpack.c.l.b16 %v447
        %v487 = vunpack.c.l.b16 %v448
        %v488 = vunpack.c.l.b16 %v449
        %v489 = vunpack.c.l.b16 %v450
        %v490 = vunpack.c.l.b16 %v451
        %v491 = vunpack.c.l.b16 %v452
        %v492 = vunpack.c.l.b16 %v453
        %v493 = vunpack.c.l.b16 %v454
        %v494 = vunpack.c.l.b16 %v455
        %v495 = vunpack.c.l.b16 %v456
        %v496 = vunpack.c.l.b16 %v457
        %v497 = vunpack.c.l.b16 %v458
        %v498 = vpack.c.b16 %v483, %v482
        %v499 = vpack.c.b16 %v485, %v484
        %v500 = vpack.c.b16 %v487, %v486
        %v501 = vpack.c.b16 %v489, %v488
        %v502 = vpack.c.b16 %v491, %v490
        %v503 = vpack.c.b16 %v493, %v492
        %v504 = vpack.c.b16 %v495, %v494
        %v505 = vpack.c.b16 %v497, %v496
        %514 = vmatprep.subr.bf16.mxu0 0
        %515 = vmatpush1.bf16.msra.mxu0 %v505
        %516 = vmatprep.subr.bf16.mxu0 0
        %517 = vmatpush1.bf16.msra.mxu0 %v504
        %518 = vmatprep.subr.bf16.mxu0 0
        %519 = vmatpush1.bf16.msra.mxu0 %v503
        %520 = vmatprep.subr.bf16.mxu0 0
        %521 = vmatpush1.bf16.msra.mxu0 %v502
        %522 = vmatprep.subr.bf16.mxu0 0
        %523 = vmatpush1.bf16.msra.mxu0 %v501
        %524 = vmatprep.subr.bf16.mxu0 0
        %525 = vmatpush1.bf16.msra.mxu0 %v500
        %526 = vmatprep.subr.bf16.mxu0 0
        %527 = vmatpush1.bf16.msra.mxu0 %v499
        %528 = vmatprep.subr.bf16.mxu0 0
        %529 = vmatpush1.bf16.msra.mxu0 %v498
        %530 = vmatprep.subr.bf16.mxu0 0
        %531 = vmatpush2.bf16.msra.mxu0 0
        %532 = vmatprep.subr.bf16.mxu0 0
        %533 = vmatpush2.bf16.msra.mxu0 0
        %534 = vmatprep.subr.bf16.mxu0 0
        %535 = vmatpush2.bf16.msra.mxu0 0
        %536 = vmatprep.subr.bf16.mxu0 0
        %537 = vmatpush2.bf16.msra.mxu0 0
        %538 = vmatprep.subr.bf16.mxu0 0
        %539 = vmatpush2.bf16.msra.mxu0 0
        %540 = vmatprep.subr.bf16.mxu0 0
        %541 = vmatpush2.bf16.msra.mxu0 0
        %542 = vmatprep.subr.bf16.mxu0 0
        %543 = vmatpush2.bf16.msra.mxu0 0
        %544 = vmatprep.subr.bf16.mxu0 0
        %545 = vmatpush2.bf16.msra.mxu0 0
        %546 = vmatprep.mubr.bf16.mxu0 0
        %547 = vmatmul.mubr.bf16.gmra.mxu0 %v442
        %v548 = vpop.f32.mrf.mxu0
        %v549 = vadd.f32 %v464, %v548
        %v550 = vpop.f32.mrf.mxu0
        %v551 = vpop.f32.mrf.mxu0
        %v552 = vpop.f32.mrf.mxu0
        %553 = vdwg.mxu0
        %v554 = vadd.f32 %v324, %v549
        %555 = vadd.xlane.f32.xlu0 %v554
        %v556 = vpop.xlane.xlu0 %555
        %v557 = vrcp.pop 128.0
        %v558 = vmul.f32 %v556, %v557
        %v559 = vsub.f32 %v554, %v558
        %v560 = vmul.f32 %v559, %v559
        %561 = vadd.xlane.f32.xlu0 %v560
        %v562 = vpop.xlane.xlu0 %561
        %v563 = vmul.f32 %v562, %v557
        %v564 = vadd.f32 %v563, 1e-05
        %v565 = vrsqrt.pop %v564
        %v566 = vmul.f32 %v559, %v565
        %v567 = vld [vmem:[%s5] sm:$0x1]
        %v569 = vlaneseq
        %v570 = vshrl.u32 %v569, 7
        %v571 = vsub.s32 0, %v570
        %v572 = vrot.slane %v567, %v571
        %v574 = vmul.f32 %v566, %v572
        %v575 = vld [vmem:[%s6] sm:$0x1]
        %v577 = vlaneseq
        %v578 = vshrl.u32 %v577, 7
        %v579 = vsub.s32 0, %v578
        %v580 = vrot.slane %v575, %v579
        %v582 = vadd.f32 %v574, %v580
        %583 = vst [vmem:[%s322] sm:$0xff] %v582
        %s584 = sand.u32 %s185, 1
        %s585 = scalar_lea.sflag [#allocation4], %s584
        %s586 = sand.u32 %s185, 1
        %s587 = smul.addr %s586, 8
        %s588 = scalar_lea.vmem [#allocation8], %s587
        // Predicated region
        $region61: #{tpu_custom_call.1} parent=47 // pred_check
          %p589 = pneg %p195
        $region62: #{tpu_custom_call.1} parent=47 // pred_check_branch
          %591 = sbr.rel (%p589) target = $region64
        $region63: #{tpu_custom_call.1} parent=47 // pred_region
          %s593 = ssub.s32 128, 128
          %594 = vsyncadd %s585, %s593
          %s595 = smul.addr %s25, 128
          %s596 = scalar_lea.hbm %s7, %s595
          %s598 = sshll.u32 %s588, 4
          %s599 = int_to_ptr.vmem [resolvable:$true] %s598
          %601 = dma.vmem_to_hbm [thread:$0]  %s599, 128, %s596, %s585
        $region64: #{tpu_custom_call.1} parent=47 // pred_fallthru
          _
      $region48: #{tpu_custom_call.1} parent=5 // pred_fallthru
        _
      %p602 = scmp.le.s32.totalorder 2, %s20
      // Predicated region
      $region65: #{tpu_custom_call.1} parent=5 // pred_check
        %p603 = pneg %p602
      $region66: #{tpu_custom_call.1} parent=5 // pred_check_branch
        %605 = sbr.rel (%p603) target = $region68
      $region67: #{tpu_custom_call.1} parent=5 // pred_region
        %s606 = ssub.s32 %s20, 2
        // Predicated region
        $region69: #{tpu_custom_call.1} parent=67 // pred_check
          %p607 = pneg %p201
        $region70: #{tpu_custom_call.1} parent=67 // pred_check_branch
          %609 = sbr.rel (%p607) target = $region72
        $region71: #{tpu_custom_call.1} parent=67 // pred_region
          %s610 = sand.u32 %s186, 1
          %s611 = scalar_lea.sflag [#allocation4], %s610
          %s612 = sand.u32 %s186, 1
          %s613 = smul.addr %s612, 8
          %s614 = scalar_lea.vmem [#allocation8], %s613
          %615 = dma.done %s611, 128
        $region72: #{tpu_custom_call.1} parent=67 // pred_fallthru
          _
      $region68: #{tpu_custom_call.1} parent=5 // pred_fallthru
        _
    $region6: #{tpu_custom_call.1} parent=1 // loop_footer
      %s24 = sadd.s32 1, %s20
    $region7: #{tpu_custom_call.1} parent=1 // loop_footer_branch
      %19 = sbr.rel target = $region3
    $region8: #{tpu_custom_call.1} parent=1 // loop_exit
      _
    %616 = vsyncpa [#allocation3], 1
    %s617 = scalar_lea.sflag [#allocation3], 1
    %618 = vsyncpa %s617, 1
    %619 = vsyncpa [#allocation6], 1
    %620 = vsyncpa [#allocation4], 1
    %s621 = scalar_lea.sflag [#allocation4], 1
    %622 = vsyncpa %s621, 1

</llo_original>
